<compile_context>
chip_gen: v7x
topology: tpu7x:2x2x1
jax: 0.10.0
libtpu: 0.0.40
codegen_flags: <defaults>
</compile_context>

<pallas_src>
import functools

import jax
import jax.numpy as jnp
from jax.experimental import pallas as pl
from jax.experimental.pallas import tpu as pltpu

BINS = 10
LOSS_WEIGHT = 1.0


def _round_up(x, m):
    return ((x + m - 1) // m) * m


def ghmc_kernel(pred_ref, tgt_ref, acc_ref, *, bins):
    """One row-tile step of the streaming GHM-C partial reduction.

    pred_ref: (TR, 128) logits (any float dtype; upcast to f32 in-kernel).
    tgt_ref:  (TR, 128) int8 in {-1, 0, 1}; -1 marks invalid / padding lanes.
    acc_ref:  (1, ACC_ROWS, 128) f32 output block, revisited across the tile axis:
              row i        -> per-lane count of elements falling in bin i,
              row bins + i -> per-lane sum of BCE over elements in bin i.
    """
    @pl.when(pl.program_id(1) == 0)
    def _init():
        acc_ref[...] = jnp.zeros_like(acc_ref)

    pred = pred_ref[...].astype(jnp.float32)          # (TR, 128)
    tgt = tgt_ref[...].astype(jnp.int32)              # (TR, 128) in {-1, 0, 1}

    valid = tgt >= 0
    target = (tgt == 1).astype(jnp.float32)

    # Shared transcendentals: one exp, one log1p, one approx reciprocal per element.
    e = jnp.exp(-jnp.abs(pred))
    log1pe = jnp.log1p(e)
    r = pl.reciprocal(1.0 + e, approx=True)           # sigmoid(|pred|) (EUP slot)
    sig = jnp.where(pred >= 0.0, r, 1.0 - r)          # sigmoid(pred)

    g = jnp.abs(sig - target)                         # gradient norm in [0, 1]
    # Stable BCE-with-logits (same formulation PyTorch uses).
    bce = jnp.maximum(pred, 0.0) - pred * target + log1pe

    # One bin index per element; each bin mask is then a single equality compare.
    # bin = min(floor(g * bins), bins - 1) reproduces edges[i] = i / bins and
    # edges[-1] = 1 + 1e-6 (up to f32 rounding exactly at interior edges).
    bidx = jnp.minimum((g * jnp.float32(bins)).astype(jnp.int32), bins - 1)
    bidx = jnp.where(valid, bidx, bins)               # invalid / padding never match a bin

    for i in range(bins):
        inb = bidx == i
        cnt = jnp.sum(inb.astype(jnp.float32), axis=0, keepdims=True)     # (1, 128)
        bsum = jnp.sum(jnp.where(inb, bce, 0.0), axis=0, keepdims=True)   # (1, 128)
        acc_ref[0, pl.ds(i, 1), :] = acc_ref[0, pl.ds(i, 1), :] + cnt
        acc_ref[0, pl.ds(bins + i, 1), :] = acc_ref[0, pl.ds(bins + i, 1), :] + bsum


def ghmc_loss(pred, target_int, label_weight=None, *, bins=BINS, momentum=0.0,
              loss_weight=LOSS_WEIGHT, tile_rows=2048, num_slices=2):
    """GHM-C loss. pred: [N, 2] float logits; target_int: [N] int labels in {0, 1}.

    label_weight (optional, [N, 2]): validity mask; entries <= 0 are ignored (encoded
    in-band as -1 in the int8 target plane, no extra HBM array).
    """
    if momentum > 0.0:
        # TODO(synk): momentum > 0 (EMA acc_sum buffer) not implemented.
        raise NotImplementedError("GHMC momentum > 0 is not implemented in the Pallas kernel.")
    n, c = pred.shape
    if c != 2:
        raise ValueError("GHMC scatters integer targets into 2 classes; pred must be [N, 2].")

    lab = target_int.reshape(-1).astype(jnp.int32)
    # int8 one-hot target plane; -1 marks invalid (label_weight <= 0) and padding.
    tgt = (lab[:, None] == jnp.arange(c, dtype=jnp.int32)[None, :]).astype(jnp.int8)
    if label_weight is not None:
        tgt = jnp.where(label_weight.astype(jnp.float32) > 0.0, tgt, jnp.int8(-1))

    total = 2 * n
    rows = max(pl.cdiv(total, 128), 1)

    # Parallel slices (leading grid axis): ~2x on v7x's two TensorCores, harmless elsewhere.
    ns = max(1, int(num_slices))
    if rows < 32 * ns:
        ns = 1
    rows_padded = _round_up(rows, 32 * ns)            # 32-row granularity (int8 sublane packing)
    rows_per_slice = rows_padded // ns

    # Row tile: largest multiple-of-32 divisor of rows_per_slice that is <= tile_rows.
    k = rows_per_slice // 32
    dmax = max(1, min(k, max(32, int(tile_rows)) // 32))
    d = 1
    for cand in range(dmax, 0, -1):
        if k % cand == 0:
            d = cand
            break
    tr = 32 * d
    tiles_per_slice = rows_per_slice // tr

    pad = rows_padded * 128 - total
    pred_flat = pred.reshape(-1)                      # keep caller dtype; upcast in-kernel
    tgt_flat = tgt.reshape(-1)
    if pad:                                           # skip the full-array copy when aligned
        pred_flat = jnp.pad(pred_flat, (0, pad))
        tgt_flat = jnp.pad(tgt_flat, (0, pad), constant_values=-1)
    pred2d = pred_flat.reshape(rows_padded, 128)
    tgt2d = tgt_flat.reshape(rows_padded, 128)

    acc_rows = _round_up(2 * int(bins), 8)
    kernel = functools.partial(ghmc_kernel, bins=int(bins))
    in_map = lambda s, t: (s * tiles_per_slice + t, 0)

    partials = pl.pallas_call(
        kernel,
        out_shape=jax.ShapeDtypeStruct((ns, acc_rows, 128), jnp.float32),
        grid_spec=pltpu.PrefetchScalarGridSpec(
            num_scalar_prefetch=0,
            grid=(ns, tiles_per_slice),
            in_specs=[
                pl.BlockSpec((tr, 128), in_map),
                pl.BlockSpec((tr, 128), in_map),
            ],
            out_specs=pl.BlockSpec((1, acc_rows, 128), lambda s, t: (s, 0, 0)),
        ),
        compiler_params=pltpu.CompilerParams(
            dimension_semantics=("parallel", "arbitrary"),
            vmem_limit_bytes=64 * 1024 * 1024,
        ),
    )(pred2d, tgt2d)

    # Tiny finalize (O(bins) numbers) in plain JAX: cross-lane/slice reduce + bin math.
    sums = partials.sum(axis=(0, 2))                  # (acc_rows,)
    counts = sums[:bins]
    bce_sums = sums[bins:2 * bins]
    nonempty = counts > 0.0
    nbins = jnp.sum(nonempty.astype(jnp.float32))
    per_bin = jnp.where(nonempty, bce_sums / jnp.maximum(counts, 1.0), 0.0)
    loss = jnp.where(nbins > 0.0, jnp.sum(per_bin) / jnp.maximum(nbins, 1.0), 0.0)
    return loss * jnp.float32(loss_weight)


if __name__ == "__main__":
    key = jax.random.PRNGKey(0)
    k1, k2, k3, k4 = jax.random.split(key, 4)

    # Tiny case (single tile, padded-remainder path), consistent with the module ([N, 2] logits).
    N1 = 8
    pred1 = jax.random.normal(k1, (N1, 2), jnp.float32)
    tgt1 = jax.random.randint(k2, (N1,), 0, 2, jnp.int32)
    loss1 = ghmc_loss(pred1, tgt1)

    # Same case with a label_weight validity mask (exercises the in-band -1 / invalid path).
    lw1 = (jax.random.uniform(k4, (N1, 2)) > 0.25).astype(jnp.float32)
    loss2 = ghmc_loss(pred1, tgt1, lw1)

    # Larger case with a small tile: 2 parallel slices x 2 accumulation steps, no pad copy.
    N2 = 8192
    pred2 = jax.random.normal(k3, (N2, 2), jnp.float32)
    tgt2 = jax.random.randint(k4, (N2,), 0, 2, jnp.int32)
    loss3 = ghmc_loss(pred2, tgt2, tile_rows=32)

    jax.block_until_ready((loss1, loss2, loss3))
    print("KERNEL_OK")
</pallas_src>

<mosaic_0001>
module attributes {stable_mosaic.version = 11 : i64} {
  func.func @ghmc_kernel(%arg0: i32, %arg1: i32, %arg2: memref<32x128xf32, #tpu.memory_space<vmem>>, %arg3: memref<32x128xi8, #tpu.memory_space<vmem>>, %arg4: memref<1x24x128xf32, #tpu.memory_space<vmem>>) attributes {dimension_semantics = [#tpu.dimension_semantics<parallel>, #tpu.dimension_semantics<arbitrary>], iteration_bounds = array<i64: 1, 1>, scalar_prefetch = 0 : i64, scratch_operands = 0 : i64, tpu.core_type = #tpu.core_type<tc>, window_params = [{transform_indices = @transform_0, window_bounds = array<i64: 32, 128>}, {transform_indices = @transform_1, window_bounds = array<i64: 32, 128>}, {transform_indices = @transform_2, window_bounds = array<i64: 1, 24, 128>}]} {
    %c0_i32 = arith.constant 0 : i32
    %0 = arith.cmpi eq, %arg1, %c0_i32 : i32
    %1 = arith.extui %0 : i1 to i32
    %c0_i32_0 = arith.constant 0 : i32
    %2 = arith.cmpi ne, %1, %c0_i32_0 : i32
    scf.if %2 {
      %cst_144 = arith.constant 0.000000e+00 : f32
      %259 = vector.broadcast %cst_144 : f32 to vector<1x24x128xf32>
      %c0_145 = arith.constant 0 : index
      %c0_146 = arith.constant 0 : index
      %c0_147 = arith.constant 0 : index
      %260 = vector.load %arg4[%c0_145, %c0_146, %c0_147] : memref<1x24x128xf32, #tpu.memory_space<vmem>>, vector<1x24x128xf32>
      tpu.vector_store %arg4[%c0_145, %c0_146, %c0_147], %259 {strides = array<i32>} : memref<1x24x128xf32, #tpu.memory_space<vmem>>, vector<1x24x128xf32>,
    } else {
    }
    %c0 = arith.constant 0 : index
    %c0_1 = arith.constant 0 : index
    %3 = vector.load %arg2[%c0, %c0_1] : memref<32x128xf32, #tpu.memory_space<vmem>>, vector<32x128xf32>
    %c0_2 = arith.constant 0 : index
    %c0_3 = arith.constant 0 : index
    %4 = vector.load %arg3[%c0_2, %c0_3] : memref<32x128xi8, #tpu.memory_space<vmem>>, vector<32x128xi8>
    %5 = arith.extsi %4 : vector<32x128xi8> to vector<32x128xi32>
    %c0_i32_4 = arith.constant 0 : i32
    %6 = vector.broadcast %c0_i32_4 : i32 to vector<32x128xi32>
    %7 = arith.cmpi sge, %5, %6 : vector<32x128xi32>
    %c1_i32 = arith.constant 1 : i32
    %8 = vector.broadcast %c1_i32 : i32 to vector<32x128xi32>
    %9 = arith.cmpi eq, %5, %8 : vector<32x128xi32>
    %10 = arith.extui %9 : vector<32x128xi1> to vector<32x128xi32>
    %11 = arith.sitofp %10 : vector<32x128xi32> to vector<32x128xf32>
    %12 = math.absf %3 : vector<32x128xf32>
    %cst = arith.constant 0.000000e+00 : f32
    %13 = vector.broadcast %cst : f32 to vector<32x128xf32>
    %14 = arith.subf %13, %12 : vector<32x128xf32>
    %15 = math.exp %14 : vector<32x128xf32>
    %16 = math.log1p %15 : vector<32x128xf32>
    %cst_5 = arith.constant 1.000000e+00 : f32
    %17 = vector.broadcast %cst_5 : f32 to vector<32x128xf32>
    %18 = arith.addf %17, %15 : vector<32x128xf32>
    %19 = tpu.reciprocal %18 {approx = true} : vector<32x128xf32> -> vector<32x128xf32>
    %cst_6 = arith.constant 0.000000e+00 : f32
    %20 = vector.broadcast %cst_6 : f32 to vector<32x128xf32>
    %21 = arith.cmpf oge, %3, %20 : vector<32x128xf32>
    %cst_7 = arith.constant 1.000000e+00 : f32
    %22 = vector.broadcast %cst_7 : f32 to vector<32x128xf32>
    %23 = arith.subf %22, %19 : vector<32x128xf32>
    %24 = arith.select %21, %19, %23 : vector<32x128xi1>, vector<32x128xf32>
    %25 = arith.subf %24, %11 : vector<32x128xf32>
    %26 = math.absf %25 : vector<32x128xf32>
    %cst_8 = arith.constant 0.000000e+00 : f32
    %27 = vector.broadcast %cst_8 : f32 to vector<32x128xf32>
    %28 = arith.maximumf %3, %27 : vector<32x128xf32>
    %29 = arith.mulf %3, %11 : vector<32x128xf32>
    %30 = arith.subf %28, %29 : vector<32x128xf32>
    %31 = arith.addf %30, %16 : vector<32x128xf32>
    %cst_9 = arith.constant 1.000000e+01 : f32
    %32 = vector.broadcast %cst_9 : f32 to vector<32x128xf32>
    %33 = arith.mulf %26, %32 : vector<32x128xf32>
    %34 = arith.fptosi %33 : vector<32x128xf32> to vector<32x128xi32>
    %c9_i32 = arith.constant 9 : i32
    %35 = vector.broadcast %c9_i32 : i32 to vector<32x128xi32>
    %36 = arith.minsi %34, %35 : vector<32x128xi32>
    %c10_i32 = arith.constant 10 : i32
    %37 = vector.broadcast %c10_i32 : i32 to vector<32x128xi32>
    %38 = arith.select %7, %36, %37 : vector<32x128xi1>, vector<32x128xi32>
    %c0_i32_10 = arith.constant 0 : i32
    %39 = vector.broadcast %c0_i32_10 : i32 to vector<32x128xi32>
    %40 = arith.cmpi eq, %38, %39 : vector<32x128xi32>
    %41 = arith.extui %40 : vector<32x128xi1> to vector<32x128xi32>
    %42 = arith.sitofp %41 : vector<32x128xi32> to vector<32x128xf32>
    %cst_11 = arith.constant dense<0.000000e+00> : vector<128xf32>
    %43 = vector.multi_reduction <add>, %42, %cst_11 [0] : vector<32x128xf32> to vector<128xf32>
    %44 = vector.shape_cast %43 : vector<128xf32> to vector<1x128xf32>
    %cst_12 = arith.constant 0.000000e+00 : f32
    %45 = vector.broadcast %cst_12 : f32 to vector<32x128xf32>
    %46 = arith.select %40, %31, %45 : vector<32x128xi1>, vector<32x128xf32>
    %cst_13 = arith.constant dense<0.000000e+00> : vector<128xf32>
    %47 = vector.multi_reduction <add>, %46, %cst_13 [0] : vector<32x128xf32> to vector<128xf32>
    %48 = vector.shape_cast %47 : vector<128xf32> to vector<1x128xf32>
    %c0_14 = arith.constant 0 : index
    %c0_15 = arith.constant 0 : index
    %c0_16 = arith.constant 0 : index
    %49 = vector.load %arg4[%c0_14, %c0_15, %c0_16] : memref<1x24x128xf32, #tpu.memory_space<vmem>>, vector<1x1x128xf32>
    %50 = vector.shape_cast %49 : vector<1x1x128xf32> to vector<1x128xf32>
    %51 = arith.addf %50, %44 : vector<1x128xf32>
    %c0_17 = arith.constant 0 : index
    %c0_18 = arith.constant 0 : index
    %c0_19 = arith.constant 0 : index
    %52 = vector.load %arg4[%c0_17, %c0_18, %c0_19] : memref<1x24x128xf32, #tpu.memory_space<vmem>>, vector<1x1x128xf32>
    %53 = vector.shape_cast %52 : vector<1x1x128xf32> to vector<1x128xf32>
    %54 = vector.shape_cast %51 : vector<1x128xf32> to vector<1x1x128xf32>
    tpu.vector_store %arg4[%c0_17, %c0_18, %c0_19], %54 {strides = array<i32>} : memref<1x24x128xf32, #tpu.memory_space<vmem>>, vector<1x1x128xf32>,
    %c0_20 = arith.constant 0 : index
    %c10 = arith.constant 10 : index
    %c0_21 = arith.constant 0 : index
    %55 = vector.load %arg4[%c0_20, %c10, %c0_21] : memref<1x24x128xf32, #tpu.memory_space<vmem>>, vector<1x1x128xf32>
    %56 = vector.shape_cast %55 : vector<1x1x128xf32> to vector<1x128xf32>
    %57 = arith.addf %56, %48 : vector<1x128xf32>
    %c0_22 = arith.constant 0 : index
    %c10_23 = arith.constant 10 : index
    %c0_24 = arith.constant 0 : index
    %58 = vector.load %arg4[%c0_22, %c10_23, %c0_24] : memref<1x24x128xf32, #tpu.memory_space<vmem>>, vector<1x1x128xf32>
    %59 = vector.shape_cast %58 : vector<1x1x128xf32> to vector<1x128xf32>
    %60 = vector.shape_cast %57 : vector<1x128xf32> to vector<1x1x128xf32>
    tpu.vector_store %arg4[%c0_22, %c10_23, %c0_24], %60 {strides = array<i32>} : memref<1x24x128xf32, #tpu.memory_space<vmem>>, vector<1x1x128xf32>,
    %c1_i32_25 = arith.constant 1 : i32
    %61 = vector.broadcast %c1_i32_25 : i32 to vector<32x128xi32>
    %62 = arith.cmpi eq, %38, %61 : vector<32x128xi32>
    %63 = arith.extui %62 : vector<32x128xi1> to vector<32x128xi32>
    %64 = arith.sitofp %63 : vector<32x128xi32> to vector<32x128xf32>
    %cst_26 = arith.constant dense<0.000000e+00> : vector<128xf32>
    %65 = vector.multi_reduction <add>, %64, %cst_26 [0] : vector<32x128xf32> to vector<128xf32>
    %66 = vector.shape_cast %65 : vector<128xf32> to vector<1x128xf32>
    %cst_27 = arith.constant 0.000000e+00 : f32
    %67 = vector.broadcast %cst_27 : f32 to vector<32x128xf32>
    %68 = arith.select %62, %31, %67 : vector<32x128xi1>, vector<32x128xf32>
    %cst_28 = arith.constant dense<0.000000e+00> : vector<128xf32>
    %69 = vector.multi_reduction <add>, %68, %cst_28 [0] : vector<32x128xf32> to vector<128xf32>
    %70 = vector.shape_cast %69 : vector<128xf32> to vector<1x128xf32>
    %c0_29 = arith.constant 0 : index
    %c1 = arith.constant 1 : index
    %c0_30 = arith.constant 0 : index
    %71 = vector.load %arg4[%c0_29, %c1, %c0_30] : memref<1x24x128xf32, #tpu.memory_space<vmem>>, vector<1x1x128xf32>
    %72 = vector.shape_cast %71 : vector<1x1x128xf32> to vector<1x128xf32>
    %73 = arith.addf %72, %66 : vector<1x128xf32>
    %c0_31 = arith.constant 0 : index
    %c1_32 = arith.constant 1 : index
    %c0_33 = arith.constant 0 : index
    %74 = vector.load %arg4[%c0_31, %c1_32, %c0_33] : memref<1x24x128xf32, #tpu.memory_space<vmem>>, vector<1x1x128xf32>
    %75 = vector.shape_cast %74 : vector<1x1x128xf32> to vector<1x128xf32>
    %76 = vector.shape_cast %73 : vector<1x128xf32> to vector<1x1x128xf32>
    tpu.vector_store %arg4[%c0_31, %c1_32, %c0_33], %76 {strides = array<i32>} : memref<1x24x128xf32, #tpu.memory_space<vmem>>, vector<1x1x128xf32>,
    %c0_34 = arith.constant 0 : index
    %c11 = arith.constant 11 : index
    %c0_35 = arith.constant 0 : index
    %77 = vector.load %arg4[%c0_34, %c11, %c0_35] : memref<1x24x128xf32, #tpu.memory_space<vmem>>, vector<1x1x128xf32>
    %78 = vector.shape_cast %77 : vector<1x1x128xf32> to vector<1x128xf32>
    %79 = arith.addf %78, %70 : vector<1x128xf32>
    %c0_36 = arith.constant 0 : index
    %c11_37 = arith.constant 11 : index
    %c0_38 = arith.constant 0 : index
    %80 = vector.load %arg4[%c0_36, %c11_37, %c0_38] : memref<1x24x128xf32, #tpu.memory_space<vmem>>, vector<1x1x128xf32>
    %81 = vector.shape_cast %80 : vector<1x1x128xf32> to vector<1x128xf32>
    %82 = vector.shape_cast %79 : vector<1x128xf32> to vector<1x1x128xf32>
    tpu.vector_store %arg4[%c0_36, %c11_37, %c0_38], %82 {strides = array<i32>} : memref<1x24x128xf32, #tpu.memory_space<vmem>>, vector<1x1x128xf32>,
    %c2_i32 = arith.constant 2 : i32
    %83 = vector.broadcast %c2_i32 : i32 to vector<32x128xi32>
    %84 = arith.cmpi eq, %38, %83 : vector<32x128xi32>
    %85 = arith.extui %84 : vector<32x128xi1> to vector<32x128xi32>
    %86 = arith.sitofp %85 : vector<32x128xi32> to vector<32x128xf32>
    %cst_39 = arith.constant dense<0.000000e+00> : vector<128xf32>
    %87 = vector.multi_reduction <add>, %86, %cst_39 [0] : vector<32x128xf32> to vector<128xf32>
    %88 = vector.shape_cast %87 : vector<128xf32> to vector<1x128xf32>
    %cst_40 = arith.constant 0.000000e+00 : f32
    %89 = vector.broadcast %cst_40 : f32 to vector<32x128xf32>
    %90 = arith.select %84, %31, %89 : vector<32x128xi1>, vector<32x128xf32>
    %cst_41 = arith.constant dense<0.000000e+00> : vector<128xf32>
    %91 = vector.multi_reduction <add>, %90, %cst_41 [0] : vector<32x128xf32> to vector<128xf32>
    %92 = vector.shape_cast %91 : vector<128xf32> to vector<1x128xf32>
    %c0_42 = arith.constant 0 : index
    %c2 = arith.constant 2 : index
    %c0_43 = arith.constant 0 : index
    %93 = vector.load %arg4[%c0_42, %c2, %c0_43] : memref<1x24x128xf32, #tpu.memory_space<vmem>>, vector<1x1x128xf32>
    %94 = vector.shape_cast %93 : vector<1x1x128xf32> to vector<1x128xf32>
    %95 = arith.addf %94, %88 : vector<1x128xf32>
    %c0_44 = arith.constant 0 : index
    %c2_45 = arith.constant 2 : index
    %c0_46 = arith.constant 0 : index
    %96 = vector.load %arg4[%c0_44, %c2_45, %c0_46] : memref<1x24x128xf32, #tpu.memory_space<vmem>>, vector<1x1x128xf32>
    %97 = vector.shape_cast %96 : vector<1x1x128xf32> to vector<1x128xf32>
    %98 = vector.shape_cast %95 : vector<1x128xf32> to vector<1x1x128xf32>
    tpu.vector_store %arg4[%c0_44, %c2_45, %c0_46], %98 {strides = array<i32>} : memref<1x24x128xf32, #tpu.memory_space<vmem>>, vector<1x1x128xf32>,
    %c0_47 = arith.constant 0 : index
    %c12 = arith.constant 12 : index
    %c0_48 = arith.constant 0 : index
    %99 = vector.load %arg4[%c0_47, %c12, %c0_48] : memref<1x24x128xf32, #tpu.memory_space<vmem>>, vector<1x1x128xf32>
    %100 = vector.shape_cast %99 : vector<1x1x128xf32> to vector<1x128xf32>
    %101 = arith.addf %100, %92 : vector<1x128xf32>
    %c0_49 = arith.constant 0 : index
    %c12_50 = arith.constant 12 : index
    %c0_51 = arith.constant 0 : index
    %102 = vector.load %arg4[%c0_49, %c12_50, %c0_51] : memref<1x24x128xf32, #tpu.memory_space<vmem>>, vector<1x1x128xf32>
    %103 = vector.shape_cast %102 : vector<1x1x128xf32> to vector<1x128xf32>
    %104 = vector.shape_cast %101 : vector<1x128xf32> to vector<1x1x128xf32>
    tpu.vector_store %arg4[%c0_49, %c12_50, %c0_51], %104 {strides = array<i32>} : memref<1x24x128xf32, #tpu.memory_space<vmem>>, vector<1x1x128xf32>,
    %c3_i32 = arith.constant 3 : i32
    %105 = vector.broadcast %c3_i32 : i32 to vector<32x128xi32>
    %106 = arith.cmpi eq, %38, %105 : vector<32x128xi32>
    %107 = arith.extui %106 : vector<32x128xi1> to vector<32x128xi32>
    %108 = arith.sitofp %107 : vector<32x128xi32> to vector<32x128xf32>
    %cst_52 = arith.constant dense<0.000000e+00> : vector<128xf32>
    %109 = vector.multi_reduction <add>, %108, %cst_52 [0] : vector<32x128xf32> to vector<128xf32>
    %110 = vector.shape_cast %109 : vector<128xf32> to vector<1x128xf32>
    %cst_53 = arith.constant 0.000000e+00 : f32
    %111 = vector.broadcast %cst_53 : f32 to vector<32x128xf32>
    %112 = arith.select %106, %31, %111 : vector<32x128xi1>, vector<32x128xf32>
    %cst_54 = arith.constant dense<0.000000e+00> : vector<128xf32>
    %113 = vector.multi_reduction <add>, %112, %cst_54 [0] : vector<32x128xf32> to vector<128xf32>
    %114 = vector.shape_cast %113 : vector<128xf32> to vector<1x128xf32>
    %c0_55 = arith.constant 0 : index
    %c3 = arith.constant 3 : index
    %c0_56 = arith.constant 0 : index
    %115 = vector.load %arg4[%c0_55, %c3, %c0_56] : memref<1x24x128xf32, #tpu.memory_space<vmem>>, vector<1x1x128xf32>
    %116 = vector.shape_cast %115 : vector<1x1x128xf32> to vector<1x128xf32>
    %117 = arith.addf %116, %110 : vector<1x128xf32>
    %c0_57 = arith.constant 0 : index
    %c3_58 = arith.constant 3 : index
    %c0_59 = arith.constant 0 : index
    %118 = vector.load %arg4[%c0_57, %c3_58, %c0_59] : memref<1x24x128xf32, #tpu.memory_space<vmem>>, vector<1x1x128xf32>
    %119 = vector.shape_cast %118 : vector<1x1x128xf32> to vector<1x128xf32>
    %120 = vector.shape_cast %117 : vector<1x128xf32> to vector<1x1x128xf32>
    tpu.vector_store %arg4[%c0_57, %c3_58, %c0_59], %120 {strides = array<i32>} : memref<1x24x128xf32, #tpu.memory_space<vmem>>, vector<1x1x128xf32>,
    %c0_60 = arith.constant 0 : index
    %c13 = arith.constant 13 : index
    %c0_61 = arith.constant 0 : index
    %121 = vector.load %arg4[%c0_60, %c13, %c0_61] : memref<1x24x128xf32, #tpu.memory_space<vmem>>, vector<1x1x128xf32>
    %122 = vector.shape_cast %121 : vector<1x1x128xf32> to vector<1x128xf32>
    %123 = arith.addf %122, %114 : vector<1x128xf32>
    %c0_62 = arith.constant 0 : index
    %c13_63 = arith.constant 13 : index
    %c0_64 = arith.constant 0 : index
    %124 = vector.load %arg4[%c0_62, %c13_63, %c0_64] : memref<1x24x128xf32, #tpu.memory_space<vmem>>, vector<1x1x128xf32>
    %125 = vector.shape_cast %124 : vector<1x1x128xf32> to vector<1x128xf32>
    %126 = vector.shape_cast %123 : vector<1x128xf32> to vector<1x1x128xf32>
    tpu.vector_store %arg4[%c0_62, %c13_63, %c0_64], %126 {strides = array<i32>} : memref<1x24x128xf32, #tpu.memory_space<vmem>>, vector<1x1x128xf32>,
    %c4_i32 = arith.constant 4 : i32
    %127 = vector.broadcast %c4_i32 : i32 to vector<32x128xi32>
    %128 = arith.cmpi eq, %38, %127 : vector<32x128xi32>
    %129 = arith.extui %128 : vector<32x128xi1> to vector<32x128xi32>
    %130 = arith.sitofp %129 : vector<32x128xi32> to vector<32x128xf32>
    %cst_65 = arith.constant dense<0.000000e+00> : vector<128xf32>
    %131 = vector.multi_reduction <add>, %130, %cst_65 [0] : vector<32x128xf32> to vector<128xf32>
    %132 = vector.shape_cast %131 : vector<128xf32> to vector<1x128xf32>
    %cst_66 = arith.constant 0.000000e+00 : f32
    %133 = vector.broadcast %cst_66 : f32 to vector<32x128xf32>
    %134 = arith.select %128, %31, %133 : vector<32x128xi1>, vector<32x128xf32>
    %cst_67 = arith.constant dense<0.000000e+00> : vector<128xf32>
    %135 = vector.multi_reduction <add>, %134, %cst_67 [0] : vector<32x128xf32> to vector<128xf32>
    %136 = vector.shape_cast %135 : vector<128xf32> to vector<1x128xf32>
    %c0_68 = arith.constant 0 : index
    %c4 = arith.constant 4 : index
    %c0_69 = arith.constant 0 : index
    %137 = vector.load %arg4[%c0_68, %c4, %c0_69] : memref<1x24x128xf32, #tpu.memory_space<vmem>>, vector<1x1x128xf32>
    %138 = vector.shape_cast %137 : vector<1x1x128xf32> to vector<1x128xf32>
    %139 = arith.addf %138, %132 : vector<1x128xf32>
    %c0_70 = arith.constant 0 : index
    %c4_71 = arith.constant 4 : index
    %c0_72 = arith.constant 0 : index
    %140 = vector.load %arg4[%c0_70, %c4_71, %c0_72] : memref<1x24x128xf32, #tpu.memory_space<vmem>>, vector<1x1x128xf32>
    %141 = vector.shape_cast %140 : vector<1x1x128xf32> to vector<1x128xf32>
    %142 = vector.shape_cast %139 : vector<1x128xf32> to vector<1x1x128xf32>
    tpu.vector_store %arg4[%c0_70, %c4_71, %c0_72], %142 {strides = array<i32>} : memref<1x24x128xf32, #tpu.memory_space<vmem>>, vector<1x1x128xf32>,
    %c0_73 = arith.constant 0 : index
    %c14 = arith.constant 14 : index
    %c0_74 = arith.constant 0 : index
    %143 = vector.load %arg4[%c0_73, %c14, %c0_74] : memref<1x24x128xf32, #tpu.memory_space<vmem>>, vector<1x1x128xf32>
    %144 = vector.shape_cast %143 : vector<1x1x128xf32> to vector<1x128xf32>
    %145 = arith.addf %144, %136 : vector<1x128xf32>
    %c0_75 = arith.constant 0 : index
    %c14_76 = arith.constant 14 : index
    %c0_77 = arith.constant 0 : index
    %146 = vector.load %arg4[%c0_75, %c14_76, %c0_77] : memref<1x24x128xf32, #tpu.memory_space<vmem>>, vector<1x1x128xf32>
    %147 = vector.shape_cast %146 : vector<1x1x128xf32> to vector<1x128xf32>
    %148 = vector.shape_cast %145 : vector<1x128xf32> to vector<1x1x128xf32>
    tpu.vector_store %arg4[%c0_75, %c14_76, %c0_77], %148 {strides = array<i32>} : memref<1x24x128xf32, #tpu.memory_space<vmem>>, vector<1x1x128xf32>,
    %c5_i32 = arith.constant 5 : i32
    %149 = vector.broadcast %c5_i32 : i32 to vector<32x128xi32>
    %150 = arith.cmpi eq, %38, %149 : vector<32x128xi32>
    %151 = arith.extui %150 : vector<32x128xi1> to vector<32x128xi32>
    %152 = arith.sitofp %151 : vector<32x128xi32> to vector<32x128xf32>
    %cst_78 = arith.constant dense<0.000000e+00> : vector<128xf32>
    %153 = vector.multi_reduction <add>, %152, %cst_78 [0] : vector<32x128xf32> to vector<128xf32>
    %154 = vector.shape_cast %153 : vector<128xf32> to vector<1x128xf32>
    %cst_79 = arith.constant 0.000000e+00 : f32
    %155 = vector.broadcast %cst_79 : f32 to vector<32x128xf32>
    %156 = arith.select %150, %31, %155 : vector<32x128xi1>, vector<32x128xf32>
    %cst_80 = arith.constant dense<0.000000e+00> : vector<128xf32>
    %157 = vector.multi_reduction <add>, %156, %cst_80 [0] : vector<32x128xf32> to vector<128xf32>
    %158 = vector.shape_cast %157 : vector<128xf32> to vector<1x128xf32>
    %c0_81 = arith.constant 0 : index
    %c5 = arith.constant 5 : index
    %c0_82 = arith.constant 0 : index
    %159 = vector.load %arg4[%c0_81, %c5, %c0_82] : memref<1x24x128xf32, #tpu.memory_space<vmem>>, vector<1x1x128xf32>
    %160 = vector.shape_cast %159 : vector<1x1x128xf32> to vector<1x128xf32>
    %161 = arith.addf %160, %154 : vector<1x128xf32>
    %c0_83 = arith.constant 0 : index
    %c5_84 = arith.constant 5 : index
    %c0_85 = arith.constant 0 : index
    %162 = vector.load %arg4[%c0_83, %c5_84, %c0_85] : memref<1x24x128xf32, #tpu.memory_space<vmem>>, vector<1x1x128xf32>
    %163 = vector.shape_cast %162 : vector<1x1x128xf32> to vector<1x128xf32>
    %164 = vector.shape_cast %161 : vector<1x128xf32> to vector<1x1x128xf32>
    tpu.vector_store %arg4[%c0_83, %c5_84, %c0_85], %164 {strides = array<i32>} : memref<1x24x128xf32, #tpu.memory_space<vmem>>, vector<1x1x128xf32>,
    %c0_86 = arith.constant 0 : index
    %c15 = arith.constant 15 : index
    %c0_87 = arith.constant 0 : index
    %165 = vector.load %arg4[%c0_86, %c15, %c0_87] : memref<1x24x128xf32, #tpu.memory_space<vmem>>, vector<1x1x128xf32>
    %166 = vector.shape_cast %165 : vector<1x1x128xf32> to vector<1x128xf32>
    %167 = arith.addf %166, %158 : vector<1x128xf32>
    %c0_88 = arith.constant 0 : index
    %c15_89 = arith.constant 15 : index
    %c0_90 = arith.constant 0 : index
    %168 = vector.load %arg4[%c0_88, %c15_89, %c0_90] : memref<1x24x128xf32, #tpu.memory_space<vmem>>, vector<1x1x128xf32>
    %169 = vector.shape_cast %168 : vector<1x1x128xf32> to vector<1x128xf32>
    %170 = vector.shape_cast %167 : vector<1x128xf32> to vector<1x1x128xf32>
    tpu.vector_store %arg4[%c0_88, %c15_89, %c0_90], %170 {strides = array<i32>} : memref<1x24x128xf32, #tpu.memory_space<vmem>>, vector<1x1x128xf32>,
    %c6_i32 = arith.constant 6 : i32
    %171 = vector.broadcast %c6_i32 : i32 to vector<32x128xi32>
    %172 = arith.cmpi eq, %38, %171 : vector<32x128xi32>
    %173 = arith.extui %172 : vector<32x128xi1> to vector<32x128xi32>
    %174 = arith.sitofp %173 : vector<32x128xi32> to vector<32x128xf32>
    %cst_91 = arith.constant dense<0.000000e+00> : vector<128xf32>
    %175 = vector.multi_reduction <add>, %174, %cst_91 [0] : vector<32x128xf32> to vector<128xf32>
    %176 = vector.shape_cast %175 : vector<128xf32> to vector<1x128xf32>
    %cst_92 = arith.constant 0.000000e+00 : f32
    %177 = vector.broadcast %cst_92 : f32 to vector<32x128xf32>
    %178 = arith.select %172, %31, %177 : vector<32x128xi1>, vector<32x128xf32>
    %cst_93 = arith.constant dense<0.000000e+00> : vector<128xf32>
    %179 = vector.multi_reduction <add>, %178, %cst_93 [0] : vector<32x128xf32> to vector<128xf32>
    %180 = vector.shape_cast %179 : vector<128xf32> to vector<1x128xf32>
    %c0_94 = arith.constant 0 : index
    %c6 = arith.constant 6 : index
    %c0_95 = arith.constant 0 : index
    %181 = vector.load %arg4[%c0_94, %c6, %c0_95] : memref<1x24x128xf32, #tpu.memory_space<vmem>>, vector<1x1x128xf32>
    %182 = vector.shape_cast %181 : vector<1x1x128xf32> to vector<1x128xf32>
    %183 = arith.addf %182, %176 : vector<1x128xf32>
    %c0_96 = arith.constant 0 : index
    %c6_97 = arith.constant 6 : index
    %c0_98 = arith.constant 0 : index
    %184 = vector.load %arg4[%c0_96, %c6_97, %c0_98] : memref<1x24x128xf32, #tpu.memory_space<vmem>>, vector<1x1x128xf32>
    %185 = vector.shape_cast %184 : vector<1x1x128xf32> to vector<1x128xf32>
    %186 = vector.shape_cast %183 : vector<1x128xf32> to vector<1x1x128xf32>
    tpu.vector_store %arg4[%c0_96, %c6_97, %c0_98], %186 {strides = array<i32>} : memref<1x24x128xf32, #tpu.memory_space<vmem>>, vector<1x1x128xf32>,
    %c0_99 = arith.constant 0 : index
    %c16 = arith.constant 16 : index
    %c0_100 = arith.constant 0 : index
    %187 = vector.load %arg4[%c0_99, %c16, %c0_100] : memref<1x24x128xf32, #tpu.memory_space<vmem>>, vector<1x1x128xf32>
    %188 = vector.shape_cast %187 : vector<1x1x128xf32> to vector<1x128xf32>
    %189 = arith.addf %188, %180 : vector<1x128xf32>
    %c0_101 = arith.constant 0 : index
    %c16_102 = arith.constant 16 : index
    %c0_103 = arith.constant 0 : index
    %190 = vector.load %arg4[%c0_101, %c16_102, %c0_103] : memref<1x24x128xf32, #tpu.memory_space<vmem>>, vector<1x1x128xf32>
    %191 = vector.shape_cast %190 : vector<1x1x128xf32> to vector<1x128xf32>
    %192 = vector.shape_cast %189 : vector<1x128xf32> to vector<1x1x128xf32>
    tpu.vector_store %arg4[%c0_101, %c16_102, %c0_103], %192 {strides = array<i32>} : memref<1x24x128xf32, #tpu.memory_space<vmem>>, vector<1x1x128xf32>,
    %c7_i32 = arith.constant 7 : i32
    %193 = vector.broadcast %c7_i32 : i32 to vector<32x128xi32>
    %194 = arith.cmpi eq, %38, %193 : vector<32x128xi32>
    %195 = arith.extui %194 : vector<32x128xi1> to vector<32x128xi32>
    %196 = arith.sitofp %195 : vector<32x128xi32> to vector<32x128xf32>
    %cst_104 = arith.constant dense<0.000000e+00> : vector<128xf32>
    %197 = vector.multi_reduction <add>, %196, %cst_104 [0] : vector<32x128xf32> to vector<128xf32>
    %198 = vector.shape_cast %197 : vector<128xf32> to vector<1x128xf32>
    %cst_105 = arith.constant 0.000000e+00 : f32
    %199 = vector.broadcast %cst_105 : f32 to vector<32x128xf32>
    %200 = arith.select %194, %31, %199 : vector<32x128xi1>, vector<32x128xf32>
    %cst_106 = arith.constant dense<0.000000e+00> : vector<128xf32>
    %201 = vector.multi_reduction <add>, %200, %cst_106 [0] : vector<32x128xf32> to vector<128xf32>
    %202 = vector.shape_cast %201 : vector<128xf32> to vector<1x128xf32>
    %c0_107 = arith.constant 0 : index
    %c7 = arith.constant 7 : index
    %c0_108 = arith.constant 0 : index
    %203 = vector.load %arg4[%c0_107, %c7, %c0_108] : memref<1x24x128xf32, #tpu.memory_space<vmem>>, vector<1x1x128xf32>
    %204 = vector.shape_cast %203 : vector<1x1x128xf32> to vector<1x128xf32>
    %205 = arith.addf %204, %198 : vector<1x128xf32>
    %c0_109 = arith.constant 0 : index
    %c7_110 = arith.constant 7 : index
    %c0_111 = arith.constant 0 : index
    %206 = vector.load %arg4[%c0_109, %c7_110, %c0_111] : memref<1x24x128xf32, #tpu.memory_space<vmem>>, vector<1x1x128xf32>
    %207 = vector.shape_cast %206 : vector<1x1x128xf32> to vector<1x128xf32>
    %208 = vector.shape_cast %205 : vector<1x128xf32> to vector<1x1x128xf32>
    tpu.vector_store %arg4[%c0_109, %c7_110, %c0_111], %208 {strides = array<i32>} : memref<1x24x128xf32, #tpu.memory_space<vmem>>, vector<1x1x128xf32>,
    %c0_112 = arith.constant 0 : index
    %c17 = arith.constant 17 : index
    %c0_113 = arith.constant 0 : index
    %209 = vector.load %arg4[%c0_112, %c17, %c0_113] : memref<1x24x128xf32, #tpu.memory_space<vmem>>, vector<1x1x128xf32>
    %210 = vector.shape_cast %209 : vector<1x1x128xf32> to vector<1x128xf32>
    %211 = arith.addf %210, %202 : vector<1x128xf32>
    %c0_114 = arith.constant 0 : index
    %c17_115 = arith.constant 17 : index
    %c0_116 = arith.constant 0 : index
    %212 = vector.load %arg4[%c0_114, %c17_115, %c0_116] : memref<1x24x128xf32, #tpu.memory_space<vmem>>, vector<1x1x128xf32>
    %213 = vector.shape_cast %212 : vector<1x1x128xf32> to vector<1x128xf32>
    %214 = vector.shape_cast %211 : vector<1x128xf32> to vector<1x1x128xf32>
    tpu.vector_store %arg4[%c0_114, %c17_115, %c0_116], %214 {strides = array<i32>} : memref<1x24x128xf32, #tpu.memory_space<vmem>>, vector<1x1x128xf32>,
    %c8_i32 = arith.constant 8 : i32
    %215 = vector.broadcast %c8_i32 : i32 to vector<32x128xi32>
    %216 = arith.cmpi eq, %38, %215 : vector<32x128xi32>
    %217 = arith.extui %216 : vector<32x128xi1> to vector<32x128xi32>
    %218 = arith.sitofp %217 : vector<32x128xi32> to vector<32x128xf32>
    %cst_117 = arith.constant dense<0.000000e+00> : vector<128xf32>
    %219 = vector.multi_reduction <add>, %218, %cst_117 [0] : vector<32x128xf32> to vector<128xf32>
    %220 = vector.shape_cast %219 : vector<128xf32> to vector<1x128xf32>
    %cst_118 = arith.constant 0.000000e+00 : f32
    %221 = vector.broadcast %cst_118 : f32 to vector<32x128xf32>
    %222 = arith.select %216, %31, %221 : vector<32x128xi1>, vector<32x128xf32>
    %cst_119 = arith.constant dense<0.000000e+00> : vector<128xf32>
    %223 = vector.multi_reduction <add>, %222, %cst_119 [0] : vector<32x128xf32> to vector<128xf32>
    %224 = vector.shape_cast %223 : vector<128xf32> to vector<1x128xf32>
    %c0_120 = arith.constant 0 : index
    %c8 = arith.constant 8 : index
    %c0_121 = arith.constant 0 : index
    %225 = vector.load %arg4[%c0_120, %c8, %c0_121] : memref<1x24x128xf32, #tpu.memory_space<vmem>>, vector<1x1x128xf32>
    %226 = vector.shape_cast %225 : vector<1x1x128xf32> to vector<1x128xf32>
    %227 = arith.addf %226, %220 : vector<1x128xf32>
    %c0_122 = arith.constant 0 : index
    %c8_123 = arith.constant 8 : index
    %c0_124 = arith.constant 0 : index
    %228 = vector.load %arg4[%c0_122, %c8_123, %c0_124] : memref<1x24x128xf32, #tpu.memory_space<vmem>>, vector<1x1x128xf32>
    %229 = vector.shape_cast %228 : vector<1x1x128xf32> to vector<1x128xf32>
    %230 = vector.shape_cast %227 : vector<1x128xf32> to vector<1x1x128xf32>
    tpu.vector_store %arg4[%c0_122, %c8_123, %c0_124], %230 {strides = array<i32>} : memref<1x24x128xf32, #tpu.memory_space<vmem>>, vector<1x1x128xf32>,
    %c0_125 = arith.constant 0 : index
    %c18 = arith.constant 18 : index
    %c0_126 = arith.constant 0 : index
    %231 = vector.load %arg4[%c0_125, %c18, %c0_126] : memref<1x24x128xf32, #tpu.memory_space<vmem>>, vector<1x1x128xf32>
    %232 = vector.shape_cast %231 : vector<1x1x128xf32> to vector<1x128xf32>
    %233 = arith.addf %232, %224 : vector<1x128xf32>
    %c0_127 = arith.constant 0 : index
    %c18_128 = arith.constant 18 : index
    %c0_129 = arith.constant 0 : index
    %234 = vector.load %arg4[%c0_127, %c18_128, %c0_129] : memref<1x24x128xf32, #tpu.memory_space<vmem>>, vector<1x1x128xf32>
    %235 = vector.shape_cast %234 : vector<1x1x128xf32> to vector<1x128xf32>
    %236 = vector.shape_cast %233 : vector<1x128xf32> to vector<1x1x128xf32>
    tpu.vector_store %arg4[%c0_127, %c18_128, %c0_129], %236 {strides = array<i32>} : memref<1x24x128xf32, #tpu.memory_space<vmem>>, vector<1x1x128xf32>,
    %c9_i32_130 = arith.constant 9 : i32
    %237 = vector.broadcast %c9_i32_130 : i32 to vector<32x128xi32>
    %238 = arith.cmpi eq, %38, %237 : vector<32x128xi32>
    %239 = arith.extui %238 : vector<32x128xi1> to vector<32x128xi32>
    %240 = arith.sitofp %239 : vector<32x128xi32> to vector<32x128xf32>
    %cst_131 = arith.constant dense<0.000000e+00> : vector<128xf32>
    %241 = vector.multi_reduction <add>, %240, %cst_131 [0] : vector<32x128xf32> to vector<128xf32>
    %242 = vector.shape_cast %241 : vector<128xf32> to vector<1x128xf32>
    %cst_132 = arith.constant 0.000000e+00 : f32
    %243 = vector.broadcast %cst_132 : f32 to vector<32x128xf32>
    %244 = arith.select %238, %31, %243 : vector<32x128xi1>, vector<32x128xf32>
    %cst_133 = arith.constant dense<0.000000e+00> : vector<128xf32>
    %245 = vector.multi_reduction <add>, %244, %cst_133 [0] : vector<32x128xf32> to vector<128xf32>
    %246 = vector.shape_cast %245 : vector<128xf32> to vector<1x128xf32>
    %c0_134 = arith.constant 0 : index
    %c9 = arith.constant 9 : index
    %c0_135 = arith.constant 0 : index
    %247 = vector.load %arg4[%c0_134, %c9, %c0_135] : memref<1x24x128xf32, #tpu.memory_space<vmem>>, vector<1x1x128xf32>
    %248 = vector.shape_cast %247 : vector<1x1x128xf32> to vector<1x128xf32>
    %249 = arith.addf %248, %242 : vector<1x128xf32>
    %c0_136 = arith.constant 0 : index
    %c9_137 = arith.constant 9 : index
    %c0_138 = arith.constant 0 : index
    %250 = vector.load %arg4[%c0_136, %c9_137, %c0_138] : memref<1x24x128xf32, #tpu.memory_space<vmem>>, vector<1x1x128xf32>
    %251 = vector.shape_cast %250 : vector<1x1x128xf32> to vector<1x128xf32>
    %252 = vector.shape_cast %249 : vector<1x128xf32> to vector<1x1x128xf32>
    tpu.vector_store %arg4[%c0_136, %c9_137, %c0_138], %252 {strides = array<i32>} : memref<1x24x128xf32, #tpu.memory_space<vmem>>, vector<1x1x128xf32>,
    %c0_139 = arith.constant 0 : index
    %c19 = arith.constant 19 : index
    %c0_140 = arith.constant 0 : index
    %253 = vector.load %arg4[%c0_139, %c19, %c0_140] : memref<1x24x128xf32, #tpu.memory_space<vmem>>, vector<1x1x128xf32>
    %254 = vector.shape_cast %253 : vector<1x1x128xf32> to vector<1x128xf32>
    %255 = arith.addf %254, %246 : vector<1x128xf32>
    %c0_141 = arith.constant 0 : index
    %c19_142 = arith.constant 19 : index
    %c0_143 = arith.constant 0 : index
    %256 = vector.load %arg4[%c0_141, %c19_142, %c0_143] : memref<1x24x128xf32, #tpu.memory_space<vmem>>, vector<1x1x128xf32>
    %257 = vector.shape_cast %256 : vector<1x1x128xf32> to vector<1x128xf32>
    %258 = vector.shape_cast %255 : vector<1x128xf32> to vector<1x1x128xf32>
    tpu.vector_store %arg4[%c0_141, %c19_142, %c0_143], %258 {strides = array<i32>} : memref<1x24x128xf32, #tpu.memory_space<vmem>>, vector<1x1x128xf32>,
    return
  }
  func.func @transform_0(%arg0: i32, %arg1: i32) -> (i32, i32) {
    %c1_i32 = arith.constant 1 : i32
    %0 = arith.muli %arg0, %c1_i32 : i32
    %1 = arith.addi %0, %arg1 : i32
    %c0_i32 = arith.constant 0 : i32
    %c0_i32_0 = arith.constant 0 : i32
    return %1, %c0_i32 : i32, i32
  }
  func.func @transform_1(%arg0: i32, %arg1: i32) -> (i32, i32) {
    %c1_i32 = arith.constant 1 : i32
    %0 = arith.muli %arg0, %c1_i32 : i32
    %1 = arith.addi %0, %arg1 : i32
    %c0_i32 = arith.constant 0 : i32
    %c0_i32_0 = arith.constant 0 : i32
    return %1, %c0_i32 : i32, i32
  }
  func.func @transform_2(%arg0: i32, %arg1: i32) -> (i32, i32, i32) {
    %c0_i32 = arith.constant 0 : i32
    %c0_i32_0 = arith.constant 0 : i32
    %c0_i32_1 = arith.constant 0 : i32
    return %arg0, %c0_i32, %c0_i32_0 : i32, i32, i32
  }
}

</mosaic_0001>

<llo_original>
// kernel: tpu_custom_call.1
$region0: #{tpu_custom_call.1}
  #allocation0 [shape = 'u32[]', space=smem, size = 0x4, offset = 0x4, fixed_abs, tag = 'smem constant byte address 0x4 - core index']
  #allocation1 [shape = 'u32[144,128]{1,0:T(1,128)}', space=vmem, size = 0x12000, scoped, tag = 'internal scratch']
  %s0 = inlined_call_operand.hbm [shape: f32[32,128], index: 0, kind: input, shape index: {}]
  %s1 = inlined_call_operand.hbm [shape: s8[32,128], index: 1, kind: input, shape index: {}]
  %s2 = inlined_call_operand.hbm [shape: f32[1,24,128], index: 2, kind: output, shape index: {}]
  %s3 = sld [smem:[#allocation0]]
  $region30: #{tpu_custom_call.1} parent=0
    _
  %s5 = ssub.s32 1, %s3
  %s6 = scalar_select 0, %s5, %s3
  $region1: #{tpu_custom_call.1} parent=0
    #allocation2 [shape = 'u8[16384]{0}', space=vmem, size = 0x4000, scoped, tag = 'input window, operand 0, single buffered']
    #allocation3 [shape = 's32[1]{0}', space=sflag, size = 0x4, scoped, tag = 'scoped memory for tpu_custom_call.1']
    #allocation4 [shape = 's32[1]{0}', space=sflag, size = 0x4, scoped, tag = 'scoped memory for tpu_custom_call.1']
    #allocation5 [shape = 'u8[4096]{0}', space=vmem, size = 0x1000, scoped, tag = 'input window, operand 1, single buffered']
    #allocation6 [shape = 's32[1]{0}', space=sflag, size = 0x4, scoped, tag = 'scoped memory for tpu_custom_call.1']
    #allocation7 [shape = 'u8[12288]{0}', space=vmem, size = 0x3000, scoped, tag = 'output window, operand 0, single buffered']
    %7 = vsyncpa [#allocation3], 0
    %8 = vsyncpa [#allocation6], 0
    %9 = vsyncpa [#allocation4], 0
    // Predicated region
    $region2: #{tpu_custom_call.1} parent=1 // pred_check
      _
    $region3: #{tpu_custom_call.1} parent=1 // pred_check_branch
      %11 = sbr.rel (0) target = $region5
    $region4: #{tpu_custom_call.1} parent=1 // pred_region
      %s12 = sadd.s32 0, 0
      %s13 = smul.u32 4, %s12
      %s15 = ssub.s32 512, 512
      %16 = vsyncadd [#allocation3], %s15
      %s17 = smul.addr %s13, 128
      %s18 = scalar_lea.hbm %s0, %s17
      %s19 = sshll.u32 [#allocation2], 4
      %s20 = int_to_ptr.vmem [resolvable:$true] %s19
      %25 = dma.hbm_to_vmem [thread:$0]  %s18, 512, %s20, [#allocation3], 128, 128, 8
    $region5: #{tpu_custom_call.1} parent=1 // pred_fallthru
      _
    // Predicated region
    $region6: #{tpu_custom_call.1} parent=1 // pred_check
      _
    $region7: #{tpu_custom_call.1} parent=1 // pred_check_branch
      %27 = sbr.rel (0) target = $region9
    $region8: #{tpu_custom_call.1} parent=1 // pred_region
      %s28 = sadd.s32 0, 0
      %s30 = ssub.s32 128, 128
      %31 = vsyncadd [#allocation6], %s30
      %s32 = smul.addr %s28, 128
      %s33 = scalar_lea.hbm %s1, %s32
      %s35 = sshll.u32 [#allocation5], 4
      %s36 = int_to_ptr.vmem [resolvable:$true] %s35
      %38 = dma.hbm_to_vmem [thread:$0]  %s33, 128, %s36, [#allocation6]
    $region9: #{tpu_custom_call.1} parent=1 // pred_fallthru
      _
    // Predicated region
    $region10: #{tpu_custom_call.1} parent=1 // pred_check
      _
    $region11: #{tpu_custom_call.1} parent=1 // pred_check_branch
      %40 = sbr.rel (0) target = $region13
    $region12: #{tpu_custom_call.1} parent=1 // pred_region
      %41 = dma.done [#allocation3], 512
    $region13: #{tpu_custom_call.1} parent=1 // pred_fallthru
      _
    // Predicated region
    $region14: #{tpu_custom_call.1} parent=1 // pred_check
      _
    $region15: #{tpu_custom_call.1} parent=1 // pred_check_branch
      %43 = sbr.rel (0) target = $region17
    $region16: #{tpu_custom_call.1} parent=1 // pred_region
      %44 = dma.done [#allocation6], 128
    $region17: #{tpu_custom_call.1} parent=1 // pred_fallthru
      _
    %s45 = sadd.s32 0, 0
    %s46 = smul.u32 4, %s45
    %s47 = sadd.s32 0, 0
    %p48 = scmp.eq.s32.totalorder 0, 0
    // Predicated region
    $region18: #{tpu_custom_call.1} parent=1 // pred_check
      %p49 = pneg %p48
    $region19: #{tpu_custom_call.1} parent=1 // pred_check_branch
      %51 = sbr.rel (%p49) target = $region21
    $region20: #{tpu_custom_call.1} parent=1 // pred_region
      %52 = vst [vmem:[#allocation7] sm:$0xff] 0.0
      %53 = vst [vmem:[#allocation7 + $0x8] sm:$0xff] 0.0
      %54 = vst [vmem:[#allocation7 + $0x10] sm:$0xff] 0.0
    $region21: #{tpu_custom_call.1} parent=1 // pred_fallthru
      _
    %v55 = vld [vmem:[#allocation2] sm:$0xff]
    %v56 = vld [vmem:[#allocation2 + $0x8] sm:$0xff]
    %v57 = vld [vmem:[#allocation2 + $0x10] sm:$0xff]
    %v58 = vld [vmem:[#allocation2 + $0x18] sm:$0xff]
    %v59 = vld [vmem:[#allocation5] sm:$0xff]
    %v60 = vunpack.c.0.s8 %v59
    %v61 = vunpack.c.1.s8 %v59
    %v62 = vunpack.c.2.s8 %v59
    %v63 = vunpack.c.3.s8 %v59
    %vm64 = vcmp.ge.s32.totalorder %v60, 0
    %vm65 = vcmp.ge.s32.totalorder %v61, 0
    %vm66 = vcmp.ge.s32.totalorder %v62, 0
    %vm67 = vcmp.ge.s32.totalorder %v63, 0
    %vm68 = vcmp.eq.s32.totalorder %v60, 1
    %vm69 = vcmp.eq.s32.totalorder %v61, 1
    %vm70 = vcmp.eq.s32.totalorder %v62, 1
    %vm71 = vcmp.eq.s32.totalorder %v63, 1
    %v72 = vsel %vm68, 1, 0
    %v73 = vsel %vm69, 1, 0
    %v74 = vsel %vm70, 1, 0
    %v75 = vsel %vm71, 1, 0
    %v76 = vcvt.s32.f32 %v72
    %v77 = vcvt.s32.f32 %v73
    %v78 = vcvt.s32.f32 %v74
    %v79 = vcvt.s32.f32 %v75
    %v80 = vand.u32 2147483647, %v55
    %v81 = vand.u32 2147483647, %v56
    %v82 = vand.u32 2147483647, %v57
    %v83 = vand.u32 2147483647, %v58
    %v84 = vsub.f32 0.0, %v80
    %v85 = vsub.f32 0.0, %v81
    %v86 = vsub.f32 0.0, %v82
    %v87 = vsub.f32 0.0, %v83
    %v88 = vmul.f32 %v84, 1.442695
    %v89 = vpow.pop %v88
    %v90 = vmul.f32 %v85, 1.442695
    %v91 = vpow.pop %v90
    %v92 = vmul.f32 %v86, 1.442695
    %v93 = vpow.pop %v92
    %v94 = vmul.f32 %v87, 1.442695
    %v95 = vpow.pop %v94
    %v96 = vadd.f32 %v89, 1.0
    %v97 = vlog2.pop %v96
    %v98 = vmul.f32 %v97, 0.6931472
    %v99 = vmul.f32 -0.5, %v89
    %v100 = vadd.f32 %v99, 1.0
    %v101 = vmul.f32 %v100, %v89
    %v102 = vand.u32 2147483647, %v89
    %vm103 = vcmp.lt.f32.partialorder %v102, 0.0004427343
    %v104 = vsel %vm103, %v101, %v98
    %v105 = vadd.f32 %v91, 1.0
    %v106 = vlog2.pop %v105
    %v107 = vmul.f32 %v106, 0.6931472
    %v108 = vmul.f32 -0.5, %v91
    %v109 = vadd.f32 %v108, 1.0
    %v110 = vmul.f32 %v109, %v91
    %v111 = vand.u32 2147483647, %v91
    %vm112 = vcmp.lt.f32.partialorder %v111, 0.0004427343
    %v113 = vsel %vm112, %v110, %v107
    %v114 = vadd.f32 %v93, 1.0
    %v115 = vlog2.pop %v114
    %v116 = vmul.f32 %v115, 0.6931472
    %v117 = vmul.f32 -0.5, %v93
    %v118 = vadd.f32 %v117, 1.0
    %v119 = vmul.f32 %v118, %v93
    %v120 = vand.u32 2147483647, %v93
    %vm121 = vcmp.lt.f32.partialorder %v120, 0.0004427343
    %v122 = vsel %vm121, %v119, %v116
    %v123 = vadd.f32 %v95, 1.0
    %v124 = vlog2.pop %v123
    %v125 = vmul.f32 %v124, 0.6931472
    %v126 = vmul.f32 -0.5, %v95
    %v127 = vadd.f32 %v126, 1.0
    %v128 = vmul.f32 %v127, %v95
    %v129 = vand.u32 2147483647, %v95
    %vm130 = vcmp.lt.f32.partialorder %v129, 0.0004427343
    %v131 = vsel %vm130, %v128, %v125
    %v132 = vadd.f32 %v89, 1.0
    %v133 = vadd.f32 %v91, 1.0
    %v134 = vadd.f32 %v93, 1.0
    %v135 = vadd.f32 %v95, 1.0
    %v136 = vrcp.pop %v132
    %v137 = vrcp.pop %v133
    %v138 = vrcp.pop %v134
    %v139 = vrcp.pop %v135
    %vm140 = vcmp.ge.f32.partialorder %v55, 0.0
    %vm141 = vcmp.ge.f32.partialorder %v56, 0.0
    %vm142 = vcmp.ge.f32.partialorder %v57, 0.0
    %vm143 = vcmp.ge.f32.partialorder %v58, 0.0
    %v144 = vsub.f32 1.0, %v136
    %v145 = vsub.f32 1.0, %v137
    %v146 = vsub.f32 1.0, %v138
    %v147 = vsub.f32 1.0, %v139
    %v148 = vsel %vm140, %v136, %v144
    %v149 = vsel %vm141, %v137, %v145
    %v150 = vsel %vm142, %v138, %v146
    %v151 = vsel %vm143, %v139, %v147
    %v152 = vsub.f32 %v148, %v76
    %v153 = vsub.f32 %v149, %v77
    %v154 = vsub.f32 %v150, %v78
    %v155 = vsub.f32 %v151, %v79
    %v156 = vand.u32 2147483647, %v152
    %v157 = vand.u32 2147483647, %v153
    %v158 = vand.u32 2147483647, %v154
    %v159 = vand.u32 2147483647, %v155
    %v160 = vmax.f32 %v55, 0.0
    %v161 = vmax.f32 %v56, 0.0
    %v162 = vmax.f32 %v57, 0.0
    %v163 = vmax.f32 %v58, 0.0
    %v164 = vmul.f32 %v55, %v76
    %v165 = vmul.f32 %v56, %v77
    %v166 = vmul.f32 %v57, %v78
    %v167 = vmul.f32 %v58, %v79
    %v168 = vsub.f32 %v160, %v164
    %v169 = vsub.f32 %v161, %v165
    %v170 = vsub.f32 %v162, %v166
    %v171 = vsub.f32 %v163, %v167
    %v172 = vadd.f32 %v168, %v104
    %v173 = vadd.f32 %v169, %v113
    %v174 = vadd.f32 %v170, %v122
    %v175 = vadd.f32 %v171, %v131
    %v176 = vmul.f32 %v156, 10.0
    %v177 = vmul.f32 %v157, 10.0
    %v178 = vmul.f32 %v158, 10.0
    %v179 = vmul.f32 %v159, 10.0
    %v180 = vcvt.f32.s32.to.zero.pseudo %v176
    %v181 = vcvt.f32.s32.to.zero.pseudo %v177
    %v182 = vcvt.f32.s32.to.zero.pseudo %v178
    %v183 = vcvt.f32.s32.to.zero.pseudo %v179
    %vm184 = vcmp.lt.s32.totalorder %v180, 9
    %v185 = vsel %vm184, %v180, 9
    %vm186 = vcmp.lt.s32.totalorder %v181, 9
    %v187 = vsel %vm186, %v181, 9
    %vm188 = vcmp.lt.s32.totalorder %v182, 9
    %v189 = vsel %vm188, %v182, 9
    %vm190 = vcmp.lt.s32.totalorder %v183, 9
    %v191 = vsel %vm190, %v183, 9
    %v192 = vsel %vm64, %v185, 10
    %v193 = vsel %vm65, %v187, 10
    %v194 = vsel %vm66, %v189, 10
    %v195 = vsel %vm67, %v191, 10
    %vm196 = vcmp.eq.s32.totalorder %v192, 0
    %vm197 = vcmp.eq.s32.totalorder %v193, 0
    %vm198 = vcmp.eq.s32.totalorder %v194, 0
    %vm199 = vcmp.eq.s32.totalorder %v195, 0
    %v200 = vsel %vm196, 1, 0
    %v201 = vsel %vm197, 1, 0
    %v202 = vsel %vm198, 1, 0
    %v203 = vsel %vm199, 1, 0
    %v204 = vcvt.s32.f32 %v200
    %v205 = vcvt.s32.f32 %v201
    %v206 = vcvt.s32.f32 %v202
    %v207 = vcvt.s32.f32 %v203
    %v208 = vadd.f32 %v204, %v205
    %v209 = vadd.f32 %v208, %v206
    %v210 = vadd.f32 %v209, %v207
    %v211 = vrot.slane %v210, 4
    %v212 = vadd.f32 %v210, %v211
    %v213 = vrot.slane %v212, 2
    %v214 = vadd.f32 %v212, %v213
    %v215 = vrot.slane %v214, 1
    %v216 = vadd.f32 %v214, %v215
    %v217 = vsel %vm196, %v172, 0.0
    %v218 = vsel %vm197, %v173, 0.0
    %v219 = vsel %vm198, %v174, 0.0
    %v220 = vsel %vm199, %v175, 0.0
    %v221 = vadd.f32 %v217, %v218
    %v222 = vadd.f32 %v221, %v219
    %v223 = vadd.f32 %v222, %v220
    %v224 = vrot.slane %v223, 4
    %v225 = vadd.f32 %v223, %v224
    %v226 = vrot.slane %v225, 2
    %v227 = vadd.f32 %v225, %v226
    %v228 = vrot.slane %v227, 1
    %v229 = vadd.f32 %v227, %v228
    %v230 = vld [vmem:[#allocation7] sm:$0x1]
    %v231 = vadd.f32 %v230, %v216
    %232 = vst [vmem:[#allocation7] sm:$0x1] %v231
    %v233 = vld [vmem:[#allocation7 + $0xa] sm:$0x1]
    %v234 = vadd.f32 %v233, %v229
    %235 = vst [vmem:[#allocation7 + $0xa] sm:$0x1] %v234
    %vm236 = vcmp.eq.s32.totalorder %v192, 1
    %vm237 = vcmp.eq.s32.totalorder %v193, 1
    %vm238 = vcmp.eq.s32.totalorder %v194, 1
    %vm239 = vcmp.eq.s32.totalorder %v195, 1
    %v240 = vsel %vm236, 1, 0
    %v241 = vsel %vm237, 1, 0
    %v242 = vsel %vm238, 1, 0
    %v243 = vsel %vm239, 1, 0
    %v244 = vcvt.s32.f32 %v240
    %v245 = vcvt.s32.f32 %v241
    %v246 = vcvt.s32.f32 %v242
    %v247 = vcvt.s32.f32 %v243
    %v248 = vadd.f32 %v244, %v245
    %v249 = vadd.f32 %v248, %v246
    %v250 = vadd.f32 %v249, %v247
    %v251 = vrot.slane %v250, 4
    %v252 = vadd.f32 %v250, %v251
    %v253 = vrot.slane %v252, 2
    %v254 = vadd.f32 %v252, %v253
    %v255 = vrot.slane %v254, 1
    %v256 = vadd.f32 %v254, %v255
    %v257 = vsel %vm236, %v172, 0.0
    %v258 = vsel %vm237, %v173, 0.0
    %v259 = vsel %vm238, %v174, 0.0
    %v260 = vsel %vm239, %v175, 0.0
    %v261 = vadd.f32 %v257, %v258
    %v262 = vadd.f32 %v261, %v259
    %v263 = vadd.f32 %v262, %v260
    %v264 = vrot.slane %v263, 4
    %v265 = vadd.f32 %v263, %v264
    %v266 = vrot.slane %v265, 2
    %v267 = vadd.f32 %v265, %v266
    %v268 = vrot.slane %v267, 1
    %v269 = vadd.f32 %v267, %v268
    %v270 = vld [vmem:[#allocation7 + $0x1] sm:$0x1]
    %v271 = vadd.f32 %v270, %v256
    %272 = vst [vmem:[#allocation7 + $0x1] sm:$0x1] %v271
    %v273 = vld [vmem:[#allocation7 + $0xb] sm:$0x1]
    %v274 = vadd.f32 %v273, %v269
    %275 = vst [vmem:[#allocation7 + $0xb] sm:$0x1] %v274
    %vm276 = vcmp.eq.s32.totalorder %v192, 2
    %vm277 = vcmp.eq.s32.totalorder %v193, 2
    %vm278 = vcmp.eq.s32.totalorder %v194, 2
    %vm279 = vcmp.eq.s32.totalorder %v195, 2
    %v280 = vsel %vm276, 1, 0
    %v281 = vsel %vm277, 1, 0
    %v282 = vsel %vm278, 1, 0
    %v283 = vsel %vm279, 1, 0
    %v284 = vcvt.s32.f32 %v280
    %v285 = vcvt.s32.f32 %v281
    %v286 = vcvt.s32.f32 %v282
    %v287 = vcvt.s32.f32 %v283
    %v288 = vadd.f32 %v284, %v285
    %v289 = vadd.f32 %v288, %v286
    %v290 = vadd.f32 %v289, %v287
    %v291 = vrot.slane %v290, 4
    %v292 = vadd.f32 %v290, %v291
    %v293 = vrot.slane %v292, 2
    %v294 = vadd.f32 %v292, %v293
    %v295 = vrot.slane %v294, 1
    %v296 = vadd.f32 %v294, %v295
    %v297 = vsel %vm276, %v172, 0.0
    %v298 = vsel %vm277, %v173, 0.0
    %v299 = vsel %vm278, %v174, 0.0
    %v300 = vsel %vm279, %v175, 0.0
    %v301 = vadd.f32 %v297, %v298
    %v302 = vadd.f32 %v301, %v299
    %v303 = vadd.f32 %v302, %v300
    %v304 = vrot.slane %v303, 4
    %v305 = vadd.f32 %v303, %v304
    %v306 = vrot.slane %v305, 2
    %v307 = vadd.f32 %v305, %v306
    %v308 = vrot.slane %v307, 1
    %v309 = vadd.f32 %v307, %v308
    %v310 = vld [vmem:[#allocation7 + $0x2] sm:$0x1]
    %v311 = vadd.f32 %v310, %v296
    %312 = vst [vmem:[#allocation7 + $0x2] sm:$0x1] %v311
    %v313 = vld [vmem:[#allocation7 + $0xc] sm:$0x1]
    %v314 = vadd.f32 %v313, %v309
    %315 = vst [vmem:[#allocation7 + $0xc] sm:$0x1] %v314
    %vm316 = vcmp.eq.s32.totalorder %v192, 3
    %vm317 = vcmp.eq.s32.totalorder %v193, 3
    %vm318 = vcmp.eq.s32.totalorder %v194, 3
    %vm319 = vcmp.eq.s32.totalorder %v195, 3
    %v320 = vsel %vm316, 1, 0
    %v321 = vsel %vm317, 1, 0
    %v322 = vsel %vm318, 1, 0
    %v323 = vsel %vm319, 1, 0
    %v324 = vcvt.s32.f32 %v320
    %v325 = vcvt.s32.f32 %v321
    %v326 = vcvt.s32.f32 %v322
    %v327 = vcvt.s32.f32 %v323
    %v328 = vadd.f32 %v324, %v325
    %v329 = vadd.f32 %v328, %v326
    %v330 = vadd.f32 %v329, %v327
    %v331 = vrot.slane %v330, 4
    %v332 = vadd.f32 %v330, %v331
    %v333 = vrot.slane %v332, 2
    %v334 = vadd.f32 %v332, %v333
    %v335 = vrot.slane %v334, 1
    %v336 = vadd.f32 %v334, %v335
    %v337 = vsel %vm316, %v172, 0.0
    %v338 = vsel %vm317, %v173, 0.0
    %v339 = vsel %vm318, %v174, 0.0
    %v340 = vsel %vm319, %v175, 0.0
    %v341 = vadd.f32 %v337, %v338
    %v342 = vadd.f32 %v341, %v339
    %v343 = vadd.f32 %v342, %v340
    %v344 = vrot.slane %v343, 4
    %v345 = vadd.f32 %v343, %v344
    %v346 = vrot.slane %v345, 2
    %v347 = vadd.f32 %v345, %v346
    %v348 = vrot.slane %v347, 1
    %v349 = vadd.f32 %v347, %v348
    %v350 = vld [vmem:[#allocation7 + $0x3] sm:$0x1]
    %v351 = vadd.f32 %v350, %v336
    %352 = vst [vmem:[#allocation7 + $0x3] sm:$0x1] %v351
    %v353 = vld [vmem:[#allocation7 + $0xd] sm:$0x1]
    %v354 = vadd.f32 %v353, %v349
    %355 = vst [vmem:[#allocation7 + $0xd] sm:$0x1] %v354
    %vm356 = vcmp.eq.s32.totalorder %v192, 4
    %vm357 = vcmp.eq.s32.totalorder %v193, 4
    %vm358 = vcmp.eq.s32.totalorder %v194, 4
    %vm359 = vcmp.eq.s32.totalorder %v195, 4
    %v360 = vsel %vm356, 1, 0
    %v361 = vsel %vm357, 1, 0
    %v362 = vsel %vm358, 1, 0
    %v363 = vsel %vm359, 1, 0
    %v364 = vcvt.s32.f32 %v360
    %v365 = vcvt.s32.f32 %v361
    %v366 = vcvt.s32.f32 %v362
    %v367 = vcvt.s32.f32 %v363
    %v368 = vadd.f32 %v364, %v365
    %v369 = vadd.f32 %v368, %v366
    %v370 = vadd.f32 %v369, %v367
    %v371 = vrot.slane %v370, 4
    %v372 = vadd.f32 %v370, %v371
    %v373 = vrot.slane %v372, 2
    %v374 = vadd.f32 %v372, %v373
    %v375 = vrot.slane %v374, 1
    %v376 = vadd.f32 %v374, %v375
    %v377 = vsel %vm356, %v172, 0.0
    %v378 = vsel %vm357, %v173, 0.0
    %v379 = vsel %vm358, %v174, 0.0
    %v380 = vsel %vm359, %v175, 0.0
    %v381 = vadd.f32 %v377, %v378
    %v382 = vadd.f32 %v381, %v379
    %v383 = vadd.f32 %v382, %v380
    %v384 = vrot.slane %v383, 4
    %v385 = vadd.f32 %v383, %v384
    %v386 = vrot.slane %v385, 2
    %v387 = vadd.f32 %v385, %v386
    %v388 = vrot.slane %v387, 1
    %v389 = vadd.f32 %v387, %v388
    %v390 = vld [vmem:[#allocation7 + $0x4] sm:$0x1]
    %v391 = vadd.f32 %v390, %v376
    %392 = vst [vmem:[#allocation7 + $0x4] sm:$0x1] %v391
    %v393 = vld [vmem:[#allocation7 + $0xe] sm:$0x1]
    %v394 = vadd.f32 %v393, %v389
    %395 = vst [vmem:[#allocation7 + $0xe] sm:$0x1] %v394
    %vm396 = vcmp.eq.s32.totalorder %v192, 5
    %vm397 = vcmp.eq.s32.totalorder %v193, 5
    %vm398 = vcmp.eq.s32.totalorder %v194, 5
    %vm399 = vcmp.eq.s32.totalorder %v195, 5
    %v400 = vsel %vm396, 1, 0
    %v401 = vsel %vm397, 1, 0
    %v402 = vsel %vm398, 1, 0
    %v403 = vsel %vm399, 1, 0
    %v404 = vcvt.s32.f32 %v400
    %v405 = vcvt.s32.f32 %v401
    %v406 = vcvt.s32.f32 %v402
    %v407 = vcvt.s32.f32 %v403
    %v408 = vadd.f32 %v404, %v405
    %v409 = vadd.f32 %v408, %v406
    %v410 = vadd.f32 %v409, %v407
    %v411 = vrot.slane %v410, 4
    %v412 = vadd.f32 %v410, %v411
    %v413 = vrot.slane %v412, 2
    %v414 = vadd.f32 %v412, %v413
    %v415 = vrot.slane %v414, 1
    %v416 = vadd.f32 %v414, %v415
    %v417 = vsel %vm396, %v172, 0.0
    %v418 = vsel %vm397, %v173, 0.0
    %v419 = vsel %vm398, %v174, 0.0
    %v420 = vsel %vm399, %v175, 0.0
    %v421 = vadd.f32 %v417, %v418
    %v422 = vadd.f32 %v421, %v419
    %v423 = vadd.f32 %v422, %v420
    %v424 = vrot.slane %v423, 4
    %v425 = vadd.f32 %v423, %v424
    %v426 = vrot.slane %v425, 2
    %v427 = vadd.f32 %v425, %v426
    %v428 = vrot.slane %v427, 1
    %v429 = vadd.f32 %v427, %v428
    %v430 = vld [vmem:[#allocation7 + $0x5] sm:$0x1]
    %v431 = vadd.f32 %v430, %v416
    %432 = vst [vmem:[#allocation7 + $0x5] sm:$0x1] %v431
    %v433 = vld [vmem:[#allocation7 + $0xf] sm:$0x1]
    %v434 = vadd.f32 %v433, %v429
    %435 = vst [vmem:[#allocation7 + $0xf] sm:$0x1] %v434
    %vm436 = vcmp.eq.s32.totalorder %v192, 6
    %vm437 = vcmp.eq.s32.totalorder %v193, 6
    %vm438 = vcmp.eq.s32.totalorder %v194, 6
    %vm439 = vcmp.eq.s32.totalorder %v195, 6
    %v440 = vsel %vm436, 1, 0
    %v441 = vsel %vm437, 1, 0
    %v442 = vsel %vm438, 1, 0
    %v443 = vsel %vm439, 1, 0
    %v444 = vcvt.s32.f32 %v440
    %v445 = vcvt.s32.f32 %v441
    %v446 = vcvt.s32.f32 %v442
    %v447 = vcvt.s32.f32 %v443
    %v448 = vadd.f32 %v444, %v445
    %v449 = vadd.f32 %v448, %v446
    %v450 = vadd.f32 %v449, %v447
    %v451 = vrot.slane %v450, 4
    %v452 = vadd.f32 %v450, %v451
    %v453 = vrot.slane %v452, 2
    %v454 = vadd.f32 %v452, %v453
    %v455 = vrot.slane %v454, 1
    %v456 = vadd.f32 %v454, %v455
    %v457 = vsel %vm436, %v172, 0.0
    %v458 = vsel %vm437, %v173, 0.0
    %v459 = vsel %vm438, %v174, 0.0
    %v460 = vsel %vm439, %v175, 0.0
    %v461 = vadd.f32 %v457, %v458
    %v462 = vadd.f32 %v461, %v459
    %v463 = vadd.f32 %v462, %v460
    %v464 = vrot.slane %v463, 4
    %v465 = vadd.f32 %v463, %v464
    %v466 = vrot.slane %v465, 2
    %v467 = vadd.f32 %v465, %v466
    %v468 = vrot.slane %v467, 1
    %v469 = vadd.f32 %v467, %v468
    %v470 = vld [vmem:[#allocation7 + $0x6] sm:$0x1]
    %v471 = vadd.f32 %v470, %v456
    %472 = vst [vmem:[#allocation7 + $0x6] sm:$0x1] %v471
    %v473 = vld [vmem:[#allocation7 + $0x10] sm:$0x1]
    %v474 = vadd.f32 %v473, %v469
    %475 = vst [vmem:[#allocation7 + $0x10] sm:$0x1] %v474
    %vm476 = vcmp.eq.s32.totalorder %v192, 7
    %vm477 = vcmp.eq.s32.totalorder %v193, 7
    %vm478 = vcmp.eq.s32.totalorder %v194, 7
    %vm479 = vcmp.eq.s32.totalorder %v195, 7
    %v480 = vsel %vm476, 1, 0
    %v481 = vsel %vm477, 1, 0
    %v482 = vsel %vm478, 1, 0
    %v483 = vsel %vm479, 1, 0
    %v484 = vcvt.s32.f32 %v480
    %v485 = vcvt.s32.f32 %v481
    %v486 = vcvt.s32.f32 %v482
    %v487 = vcvt.s32.f32 %v483
    %v488 = vadd.f32 %v484, %v485
    %v489 = vadd.f32 %v488, %v486
    %v490 = vadd.f32 %v489, %v487
    %v491 = vrot.slane %v490, 4
    %v492 = vadd.f32 %v490, %v491
    %v493 = vrot.slane %v492, 2
    %v494 = vadd.f32 %v492, %v493
    %v495 = vrot.slane %v494, 1
    %v496 = vadd.f32 %v494, %v495
    %v497 = vsel %vm476, %v172, 0.0
    %v498 = vsel %vm477, %v173, 0.0
    %v499 = vsel %vm478, %v174, 0.0
    %v500 = vsel %vm479, %v175, 0.0
    %v501 = vadd.f32 %v497, %v498
    %v502 = vadd.f32 %v501, %v499
    %v503 = vadd.f32 %v502, %v500
    %v504 = vrot.slane %v503, 4
    %v505 = vadd.f32 %v503, %v504
    %v506 = vrot.slane %v505, 2
    %v507 = vadd.f32 %v505, %v506
    %v508 = vrot.slane %v507, 1
    %v509 = vadd.f32 %v507, %v508
    %v510 = vld [vmem:[#allocation7 + $0x7] sm:$0x1]
    %v511 = vadd.f32 %v510, %v496
    %512 = vst [vmem:[#allocation7 + $0x7] sm:$0x1] %v511
    %v513 = vld [vmem:[#allocation7 + $0x11] sm:$0x1]
    %v514 = vadd.f32 %v513, %v509
    %515 = vst [vmem:[#allocation7 + $0x11] sm:$0x1] %v514
    %vm516 = vcmp.eq.s32.totalorder %v192, 8
    %vm517 = vcmp.eq.s32.totalorder %v193, 8
    %vm518 = vcmp.eq.s32.totalorder %v194, 8
    %vm519 = vcmp.eq.s32.totalorder %v195, 8
    %v520 = vsel %vm516, 1, 0
    %v521 = vsel %vm517, 1, 0
    %v522 = vsel %vm518, 1, 0
    %v523 = vsel %vm519, 1, 0
    %v524 = vcvt.s32.f32 %v520
    %v525 = vcvt.s32.f32 %v521
    %v526 = vcvt.s32.f32 %v522
    %v527 = vcvt.s32.f32 %v523
    %v528 = vadd.f32 %v524, %v525
    %v529 = vadd.f32 %v528, %v526
    %v530 = vadd.f32 %v529, %v527
    %v531 = vrot.slane %v530, 4
    %v532 = vadd.f32 %v530, %v531
    %v533 = vrot.slane %v532, 2
    %v534 = vadd.f32 %v532, %v533
    %v535 = vrot.slane %v534, 1
    %v536 = vadd.f32 %v534, %v535
    %v537 = vsel %vm516, %v172, 0.0
    %v538 = vsel %vm517, %v173, 0.0
    %v539 = vsel %vm518, %v174, 0.0
    %v540 = vsel %vm519, %v175, 0.0
    %v541 = vadd.f32 %v537, %v538
    %v542 = vadd.f32 %v541, %v539
    %v543 = vadd.f32 %v542, %v540
    %v544 = vrot.slane %v543, 4
    %v545 = vadd.f32 %v543, %v544
    %v546 = vrot.slane %v545, 2
    %v547 = vadd.f32 %v545, %v546
    %v548 = vrot.slane %v547, 1
    %v549 = vadd.f32 %v547, %v548
    %v550 = vld [vmem:[#allocation7 + $0x8] sm:$0x1]
    %v551 = vadd.f32 %v550, %v536
    %552 = vst [vmem:[#allocation7 + $0x8] sm:$0x1] %v551
    %v553 = vld [vmem:[#allocation7 + $0x12] sm:$0x1]
    %v554 = vadd.f32 %v553, %v549
    %555 = vst [vmem:[#allocation7 + $0x12] sm:$0x1] %v554
    %vm556 = vcmp.eq.s32.totalorder %v192, 9
    %vm557 = vcmp.eq.s32.totalorder %v193, 9
    %vm558 = vcmp.eq.s32.totalorder %v194, 9
    %vm559 = vcmp.eq.s32.totalorder %v195, 9
    %v560 = vsel %vm556, 1, 0
    %v561 = vsel %vm557, 1, 0
    %v562 = vsel %vm558, 1, 0
    %v563 = vsel %vm559, 1, 0
    %v564 = vcvt.s32.f32 %v560
    %v565 = vcvt.s32.f32 %v561
    %v566 = vcvt.s32.f32 %v562
    %v567 = vcvt.s32.f32 %v563
    %v568 = vadd.f32 %v564, %v565
    %v569 = vadd.f32 %v568, %v566
    %v570 = vadd.f32 %v569, %v567
    %v571 = vrot.slane %v570, 4
    %v572 = vadd.f32 %v570, %v571
    %v573 = vrot.slane %v572, 2
    %v574 = vadd.f32 %v572, %v573
    %v575 = vrot.slane %v574, 1
    %v576 = vadd.f32 %v574, %v575
    %v577 = vsel %vm556, %v172, 0.0
    %v578 = vsel %vm557, %v173, 0.0
    %v579 = vsel %vm558, %v174, 0.0
    %v580 = vsel %vm559, %v175, 0.0
    %v581 = vadd.f32 %v577, %v578
    %v582 = vadd.f32 %v581, %v579
    %v583 = vadd.f32 %v582, %v580
    %v584 = vrot.slane %v583, 4
    %v585 = vadd.f32 %v583, %v584
    %v586 = vrot.slane %v585, 2
    %v587 = vadd.f32 %v585, %v586
    %v588 = vrot.slane %v587, 1
    %v589 = vadd.f32 %v587, %v588
    %v590 = vld [vmem:[#allocation7 + $0x9] sm:$0x1]
    %v591 = vadd.f32 %v590, %v576
    %592 = vst [vmem:[#allocation7 + $0x9] sm:$0x1] %v591
    %v593 = vld [vmem:[#allocation7 + $0x13] sm:$0x1]
    %v594 = vadd.f32 %v593, %v589
    %595 = vst [vmem:[#allocation7 + $0x13] sm:$0x1] %v594
    // Predicated region
    $region22: #{tpu_custom_call.1} parent=1 // pred_check
      _
    $region23: #{tpu_custom_call.1} parent=1 // pred_check_branch
      %597 = sbr.rel (0) target = $region25
    $region24: #{tpu_custom_call.1} parent=1 // pred_region
      %s599 = ssub.s32 384, 384
      %600 = vsyncadd [#allocation4], %s599
      %s601 = sshll.u32 [#allocation7], 4
      %s602 = int_to_ptr.vmem [resolvable:$true] %s601
      %607 = dma.vmem_to_hbm [thread:$0]  %s602, 384, %s2, [#allocation4], 128, 128, 8
    $region25: #{tpu_custom_call.1} parent=1 // pred_fallthru
      _
    // Predicated region
    $region26: #{tpu_custom_call.1} parent=1 // pred_check
      _
    $region27: #{tpu_custom_call.1} parent=1 // pred_check_branch
      %609 = sbr.rel (0) target = $region29
    $region28: #{tpu_custom_call.1} parent=1 // pred_region
      %610 = dma.done [#allocation4], 384
    $region29: #{tpu_custom_call.1} parent=1 // pred_fallthru
      _
    %611 = vsyncpa [#allocation3], 1
    %612 = vsyncpa [#allocation6], 1
    %613 = vsyncpa [#allocation4], 1

</llo_original>
